<compile_context>
chip_gen: v7x
topology: tpu7x:2x2x1
jax: 0.10.0
libtpu: 0.0.40
codegen_flags: <defaults>
</compile_context>

<pallas_src>
import functools

import jax
import jax.numpy as jnp
from jax import lax
from jax.experimental import pallas as pl
from jax.experimental.pallas import tpu as pltpu

_LANE = 128
_VMEM_BUDGET = 36 * 1024 * 1024   # working-set budget: leaves headroom under v7x's 64 MiB VMEM


def _round_up(a, b):
    return ((a + b - 1) // b) * b


def _downsample_kernel(x_ref, w_ref, b_ref, o_ref):
    # x_ref: (3*C_in, tt) stacked tap columns (time on the lane axis)
    # w_ref: (C_out, 3*C_in)   b_ref: (C_out, 1)   o_ref: (C_out, tt)
    acc = jnp.dot(w_ref[...], x_ref[...], preferred_element_type=jnp.float32)
    o_ref[...] = (acc + b_ref[...]).astype(o_ref.dtype)


@functools.partial(jax.jit, static_argnames=("block_t",))
def downsample_forward(x, weight, bias, *, block_t=2048):
    """Conv1d(dim, dim_out, kernel_size=3, stride=2, padding=1), PyTorch NCL layout.

    x:      (B, C_in, L)
    weight: (C_out, C_in, 3)
    bias:   (C_out,)
    returns (B, C_out, L_out), L_out = (L - 1)//2 + 1
    """
    B, C_in, L = x.shape
    C_out = weight.shape[0]
    L_out = (L + 2 - 3) // 2 + 1

    itemsize = jnp.dtype(x.dtype).itemsize

    # Time tile (lane axis): multiple of 128, as large as the VMEM budget allows.
    per_col = 2 * (3 * C_in + C_out) * itemsize            # double-buffered input + output cols
    fixed = 2 * (3 * C_in * C_out + C_out) * itemsize      # weight + bias (2 buffers each)
    tt = min(_round_up(block_t, _LANE), _round_up(L_out, _LANE))
    max_tt = max(_LANE, ((_VMEM_BUDGET - fixed) // per_col) // _LANE * _LANE)
    tt = max(_LANE, min(tt, max_tt))

    n_t = pl.cdiv(L_out, tt)
    L_out_pad = n_t * tt

    # Single fused tap build: pad (1 left, zeros right) + 3 strided slices + channel concat.
    # XLA fuses this into one pass over x, writing the stacked-tap tensor once (no separate
    # x_pad materialization, no three separate tap arrays as before).
    x_pad = jnp.pad(x, ((0, 0), (0, 0), (1, 2 * L_out_pad - L)))    # length 2*L_out_pad + 1
    taps = jnp.concatenate(
        [x_pad[:, :, 0:2 * L_out_pad:2],          # tap0[t] = x_pad[2t]
         x_pad[:, :, 1:2 * L_out_pad + 1:2],      # tap1[t] = x_pad[2t+1]
         x_pad[:, :, 2:2 * L_out_pad + 2:2]],     # tap2[t] = x_pad[2t+2]
        axis=1)                                    # (B, 3*C_in, L_out_pad)

    # Weight laid out to match the tap stacking: w_stacked[:, k*C_in + c] = weight[:, c, k].
    w_stacked = jnp.transpose(weight, (0, 2, 1)).reshape(C_out, 3 * C_in)
    b_col = bias.reshape(C_out, 1)

    vmem_need = fixed + per_col * tt
    vmem_limit = int(min(max(2 * vmem_need, 32 * 1024 * 1024), 48 * 1024 * 1024))

    cost = pl.CostEstimate(
        flops=2 * B * C_out * 3 * C_in * L_out,
        transcendentals=0,
        bytes_accessed=itemsize * (B * 3 * C_in * L_out_pad
                                   + 3 * C_in * C_out + C_out
                                   + B * C_out * L_out),
    )

    return pl.pallas_call(
        _downsample_kernel,
        out_shape=jax.ShapeDtypeStruct((B, C_out, L_out), x.dtype),
        grid_spec=pltpu.PrefetchScalarGridSpec(
            num_scalar_prefetch=0,
            grid=(n_t, B),
            in_specs=[
                pl.BlockSpec((pl.Squeezed(), 3 * C_in, tt), lambda i, b: (b, 0, i)),
                pl.BlockSpec((C_out, 3 * C_in), lambda i, b: (0, 0)),
                pl.BlockSpec((C_out, 1), lambda i, b: (0, 0)),
            ],
            out_specs=pl.BlockSpec((pl.Squeezed(), C_out, tt), lambda i, b: (b, 0, i)),
        ),
        compiler_params=pltpu.CompilerParams(
            dimension_semantics=("parallel", "parallel"),
            vmem_limit_bytes=vmem_limit,
        ),
        cost_estimate=cost,
    )(taps, w_stacked, b_col)


if __name__ == "__main__":
    key = jax.random.PRNGKey(0)
    k_x, k_w, k_b = jax.random.split(key, 3)

    B, C_in, C_out, L = 2, 4, 8, 16

    x = jax.random.normal(k_x, (B, C_in, L), dtype=jnp.float32)

    # deterministic PyTorch-style Conv1d init: U(-bound, bound), bound = 1/sqrt(fan_in)
    fan_in = C_in * 3
    bound = 1.0 / (fan_in ** 0.5)
    weight = jax.random.uniform(k_w, (C_out, C_in, 3), jnp.float32, -bound, bound)
    bias = jax.random.uniform(k_b, (C_out,), jnp.float32, -bound, bound)

    out = jax.block_until_ready(downsample_forward(x, weight, bias))

    # reference check against XLA conv (NCL, stride 2, pad 1)
    ref = lax.conv_general_dilated(
        x, weight, window_strides=(2,), padding=((1, 1),),
        dimension_numbers=("NCH", "OIH", "NCH"),
    ) + bias.reshape(1, C_out, 1)

    L_out = (L - 1) // 2 + 1
    assert out.shape == (B, C_out, L_out), out.shape
    assert jnp.allclose(out, ref, atol=1e-5, rtol=1e-5)

    print("KERNEL_OK")
</pallas_src>

<mosaic_0001>
module attributes {stable_mosaic.version = 11 : i64} {
  func.func @_downsample_kernel(%arg0: i32, %arg1: i32, %arg2: memref<1x12x128xf32, #tpu.memory_space<vmem>>, %arg3: memref<8x12xf32, #tpu.memory_space<vmem>>, %arg4: memref<8x1xf32, #tpu.memory_space<vmem>>, %arg5: memref<1x8x128xf32, #tpu.memory_space<vmem>>) attributes {dimension_semantics = [#tpu.dimension_semantics<parallel>, #tpu.dimension_semantics<parallel>], iteration_bounds = array<i64: 1, 2>, scalar_prefetch = 0 : i64, scratch_operands = 0 : i64, tpu.core_type = #tpu.core_type<tc>, window_params = [{transform_indices = @transform_0, window_bounds = array<i64: 1, 12, 128>}, {pipeline_mode = #tpu.pipeline_mode<synchronous>, transform_indices = @transform_1, window_bounds = array<i64: 8, 12>}, {pipeline_mode = #tpu.pipeline_mode<synchronous>, transform_indices = @transform_2, window_bounds = array<i64: 8, 1>}, {transform_indices = @transform_3, window_bounds = array<i64: 1, 8, 128>}]} {
    %c0 = arith.constant 0 : index
    %c0_0 = arith.constant 0 : index
    %0 = vector.load %arg3[%c0, %c0_0] : memref<8x12xf32, #tpu.memory_space<vmem>>, vector<8x12xf32>
    %c0_1 = arith.constant 0 : index
    %c0_2 = arith.constant 0 : index
    %c0_3 = arith.constant 0 : index
    %1 = vector.load %arg2[%c0_1, %c0_2, %c0_3] : memref<1x12x128xf32, #tpu.memory_space<vmem>>, vector<1x12x128xf32>
    %2 = vector.shape_cast %1 : vector<1x12x128xf32> to vector<12x128xf32>
    %cst = arith.constant dense<0.000000e+00> : vector<8x128xf32>
    %3 = tpu.matmul %0, %2, %cst {dimension_numbers = #tpu.dot_dimension_numbers<[1], [0], [0], [1], [0, 0, 1, 1], [], []>} : vector<8x12xf32>, vector<12x128xf32>, vector<8x128xf32> -> vector<8x128xf32>
    %c0_4 = arith.constant 0 : index
    %c0_5 = arith.constant 0 : index
    %4 = vector.load %arg4[%c0_4, %c0_5] : memref<8x1xf32, #tpu.memory_space<vmem>>, vector<8x1xf32>
    %5 = vector.broadcast %4 : vector<8x1xf32> to vector<8x128xf32>
    %6 = arith.addf %3, %5 : vector<8x128xf32>
    %c0_6 = arith.constant 0 : index
    %c0_7 = arith.constant 0 : index
    %c0_8 = arith.constant 0 : index
    %7 = vector.load %arg5[%c0_6, %c0_7, %c0_8] : memref<1x8x128xf32, #tpu.memory_space<vmem>>, vector<1x8x128xf32>
    %8 = vector.shape_cast %7 : vector<1x8x128xf32> to vector<8x128xf32>
    %9 = vector.shape_cast %6 : vector<8x128xf32> to vector<1x8x128xf32>
    tpu.vector_store %arg5[%c0_6, %c0_7, %c0_8], %9 {strides = array<i32>} : memref<1x8x128xf32, #tpu.memory_space<vmem>>, vector<1x8x128xf32>,
    return
  }
  func.func @transform_0(%arg0: i32, %arg1: i32) -> (i32, i32, i32) {
    %c0_i32 = arith.constant 0 : i32
    %c0_i32_0 = arith.constant 0 : i32
    return %arg1, %c0_i32, %arg0 : i32, i32, i32
  }
  func.func @transform_1(%arg0: i32, %arg1: i32) -> (i32, i32) {
    %c0_i32 = arith.constant 0 : i32
    %c0_i32_0 = arith.constant 0 : i32
    %c0_i32_1 = arith.constant 0 : i32
    return %c0_i32, %c0_i32_0 : i32, i32
  }
  func.func @transform_2(%arg0: i32, %arg1: i32) -> (i32, i32) {
    %c0_i32 = arith.constant 0 : i32
    %c0_i32_0 = arith.constant 0 : i32
    %c0_i32_1 = arith.constant 0 : i32
    return %c0_i32, %c0_i32_0 : i32, i32
  }
  func.func @transform_3(%arg0: i32, %arg1: i32) -> (i32, i32, i32) {
    %c0_i32 = arith.constant 0 : i32
    %c0_i32_0 = arith.constant 0 : i32
    return %arg1, %c0_i32, %arg0 : i32, i32, i32
  }
}

</mosaic_0001>

<llo_original>
// kernel: downsample_forward.1
$region0: #{downsample_forward.1}
  #allocation0 [shape = 'u32[]', space=smem, size = 0x4, offset = 0x4, fixed_abs, tag = 'smem constant byte address 0x4 - core index']
  #allocation1 [shape = 'u32[144,128]{1,0:T(1,128)}', space=vmem, size = 0x12000, scoped, tag = 'internal scratch']
  %s0 = inlined_call_operand.vmem [shape: f32[2,12,128], index: 0, kind: input, shape index: {}]
  %s1 = inlined_call_operand.vmem [shape: f32[8,12], index: 1, kind: input, shape index: {}]
  %s2 = inlined_call_operand.vmem [shape: f32[8,1], index: 2, kind: input, shape index: {}]
  %s3 = inlined_call_operand.hbm [shape: f32[2,8,8], index: 3, kind: output, shape index: {}]
  %s4 = sld [smem:[#allocation0]]
  $region45: #{downsample_forward.1} parent=0
    _
  %s6 = ssub.s32 1, %s4
  %s7 = scalar_select 0, %s6, %s4
  $region1: #{downsample_forward.1} parent=0
    #allocation2 [shape = 'u8[8192]{0}', space=vmem, size = 0x2000, scoped, tag = 'output window, operand 0']
    #allocation3 [shape = 's32[2]{0}', space=sflag, size = 0x8, scoped, tag = 'scoped memory for downsample_forward.1']
    %8 = vsyncpa [#allocation3], 0
    %s9 = scalar_lea.sflag [#allocation3], 1
    %10 = vsyncpa %s9, 0
    loop: start=0, step=1, limit=4
    $region2: #{downsample_forward.1} parent=1 // loop_pre_header
      _
    $region3: #{downsample_forward.1} parent=1 // loop_header
      %s12 = sphi 0, %s16
      %p13 = scmp.ge.s32.totalorder %s12, 4
      %s19 = sphi 0, %s31
      %s20 = sphi 0, %s27
      %s21 = sphi 0, %s19
      %s22 = sphi 0, %s20
      %s23 = sphi 0, %s21
      %s24 = sphi 0, %s22
      %s36 = sphi 0, %s38
      %s39 = sphi 0, %s36
      %s40 = sphi 0, %s39
      %s56 = sphi 0, %s40
      %s60 = sphi 0, %s60
      %s62 = sphi 0, %s60
      %s63 = sphi 0, %s62
      %s77 = sphi 0, %s63
      %s81 = sphi 0, %s81
      %s83 = sphi 0, %s81
      %s84 = sphi 0, %s83
      %s98 = sphi 0, %s84
      %s106 = sphi 0, %s108
      %s109 = sphi 0, %s106
      %s110 = sphi 0, %s109
      %s126 = sphi 0, %s110
    $region4: #{downsample_forward.1} parent=1 // loop_header_branch
      %15 = sbr.rel (%p13) target = $region8
    $region5: #{downsample_forward.1} parent=1 // loop_body
      %s17 = ssub.s32 %s12, 1
      %s18 = ssub.s32 %s12, 2
      %s25 = sadd.s32 1, %s20
      %p26 = scmp.ge.s32.totalorder %s25, 2
      %s27 = scalar_select %p26, 0, %s25
      %s28 = sadd.s32 1, %s19
      %s29 = scalar_select %p26, %s28, %s19
      %p30 = scmp.ge.s32.totalorder %s29, 1
      %s31 = scalar_select %p30, 0, %s29
      %s32 = ssub.s32 %s20, %s27
      %s33 = ssub.s32 %s19, %s31
      %s34 = sor.u32 %s32, %s33
      %p35 = scmp.eq.s32.totalorder %s34, 0
      %s37 = sadd.s32 %s36, 1
      %s38 = scalar_select %p35, %s36, %s37
      %p41 = pneg %p35
      %p42 = scmp.eq.s32.totalorder %s12, 1
      %p43 = por %p41, %p42
      %p44 = scmp.ne.s32.totalorder %s36, %s39
      %p45 = scmp.eq.s32.totalorder %s12, 0
      %p46 = por %p44, %p45
      %p47 = scmp.ne.s32.totalorder %s36, %s39
      %p48 = scmp.eq.s32.totalorder %s17, 1
      %p49 = por %p47, %p48
      %p50 = scmp.ne.s32.totalorder %s39, %s40
      %p51 = scmp.eq.s32.totalorder %s17, 0
      %p52 = por %p50, %p51
      %p53 = scmp.ne.s32.totalorder %s39, %s40
      %p54 = scmp.eq.s32.totalorder %s18, 1
      %p55 = por %p53, %p54
      %p57 = scmp.ne.s32.totalorder %s40, %s56
      %p58 = scmp.eq.s32.totalorder %s18, 0
      %p59 = por %p57, %p58
      %s61 = sadd.s32 %s60, 1
      %p64 = scmp.eq.s32.totalorder %s12, 1
      %p65 = scmp.ne.s32.totalorder %s60, %s62
      %p66 = scmp.eq.s32.totalorder %s12, 0
      %p67 = por %p65, %p66
      %p68 = scmp.ne.s32.totalorder %s60, %s62
      %p69 = scmp.eq.s32.totalorder %s17, 1
      %p70 = por %p68, %p69
      %p71 = scmp.ne.s32.totalorder %s62, %s63
      %p72 = scmp.eq.s32.totalorder %s17, 0
      %p73 = por %p71, %p72
      %p74 = scmp.ne.s32.totalorder %s62, %s63
      %p75 = scmp.eq.s32.totalorder %s18, 1
      %p76 = por %p74, %p75
      %p78 = scmp.ne.s32.totalorder %s63, %s77
      %p79 = scmp.eq.s32.totalorder %s18, 0
      %p80 = por %p78, %p79
      %s82 = sadd.s32 %s81, 1
      %p85 = scmp.eq.s32.totalorder %s12, 1
      %p86 = scmp.ne.s32.totalorder %s81, %s83
      %p87 = scmp.eq.s32.totalorder %s12, 0
      %p88 = por %p86, %p87
      %p89 = scmp.ne.s32.totalorder %s81, %s83
      %p90 = scmp.eq.s32.totalorder %s17, 1
      %p91 = por %p89, %p90
      %p92 = scmp.ne.s32.totalorder %s83, %s84
      %p93 = scmp.eq.s32.totalorder %s17, 0
      %p94 = por %p92, %p93
      %p95 = scmp.ne.s32.totalorder %s83, %s84
      %p96 = scmp.eq.s32.totalorder %s18, 1
      %p97 = por %p95, %p96
      %p99 = scmp.ne.s32.totalorder %s84, %s98
      %p100 = scmp.eq.s32.totalorder %s18, 0
      %p101 = por %p99, %p100
      %s102 = ssub.s32 %s20, %s27
      %s103 = ssub.s32 %s19, %s31
      %s104 = sor.u32 %s102, %s103
      %p105 = scmp.eq.s32.totalorder %s104, 0
      %s107 = sadd.s32 %s106, 1
      %s108 = scalar_select %p105, %s106, %s107
      %p111 = pneg %p105
      %p112 = scmp.eq.s32.totalorder %s12, 1
      %p113 = por %p111, %p112
      %p114 = scmp.ne.s32.totalorder %s106, %s109
      %p115 = scmp.eq.s32.totalorder %s12, 0
      %p116 = por %p114, %p115
      %p117 = scmp.ne.s32.totalorder %s106, %s109
      %p118 = scmp.eq.s32.totalorder %s17, 1
      %p119 = por %p117, %p118
      %p120 = scmp.ne.s32.totalorder %s109, %s110
      %p121 = scmp.eq.s32.totalorder %s17, 0
      %p122 = por %p120, %p121
      %p123 = scmp.ne.s32.totalorder %s109, %s110
      %p124 = scmp.eq.s32.totalorder %s18, 1
      %p125 = por %p123, %p124
      %p127 = scmp.ne.s32.totalorder %s110, %s126
      %p128 = scmp.eq.s32.totalorder %s18, 0
      %p129 = por %p127, %p128
      %p130 = scmp.le.s32.totalorder 1, %s12
      %p131 = scmp.lt.s32.totalorder %s12, 3
      %p132 = pnand %p130, %p131
      %p133 = pneg %p132
      // Predicated region
      $region9: #{downsample_forward.1} parent=5 // pred_check
        _
      $region10: #{downsample_forward.1} parent=5 // pred_check_branch
        %135 = sbr.rel (%p132) target = $region12
      $region11: #{downsample_forward.1} parent=5 // pred_region
        %s136 = ssub.s32 %s12, 1
        // Predicated region
        $region13: #{downsample_forward.1} parent=11 // pred_check
          %p137 = pneg %p73
        $region14: #{downsample_forward.1} parent=11 // pred_check_branch
          %139 = sbr.rel (%p137) target = $region16
        $region15: #{downsample_forward.1} parent=11 // pred_region
          _
        $region16: #{downsample_forward.1} parent=11 // pred_fallthru
          _
        // Predicated region
        $region17: #{downsample_forward.1} parent=11 // pred_check
          %p140 = pneg %p94
        $region18: #{downsample_forward.1} parent=11 // pred_check_branch
          %142 = sbr.rel (%p140) target = $region20
        $region19: #{downsample_forward.1} parent=11 // pred_region
          _
        $region20: #{downsample_forward.1} parent=11 // pred_fallthru
          _
      $region12: #{downsample_forward.1} parent=5 // pred_fallthru
        _
      %p143 = scmp.lt.s32.totalorder %s12, 2
      // Predicated region
      $region21: #{downsample_forward.1} parent=5 // pred_check
        %p144 = pneg %p143
      $region22: #{downsample_forward.1} parent=5 // pred_check_branch
        %146 = sbr.rel (%p144) target = $region24
      $region23: #{downsample_forward.1} parent=5 // pred_region
        // Predicated region
        $region25: #{downsample_forward.1} parent=23 // pred_check
          %p147 = pneg %p46
        $region26: #{downsample_forward.1} parent=23 // pred_check_branch
          %149 = sbr.rel (%p147) target = $region28
        $region27: #{downsample_forward.1} parent=23 // pred_region
          %p150 = scmp.lt.s32.totalorder %s20, 1
          %s151 = scalar_select %p150, %s20, 1
          %p152 = scmp.lt.s32.totalorder %s19, 0
          %s153 = scalar_select %p152, %s19, 0
          %s154 = smul.addr %s151, 2
          %s155 = sadd.s32 %s153, %s154
          %s156 = smul.addr %s155, 8
          %s157 = scalar_lea.vmem %s0, %s156
        $region28: #{downsample_forward.1} parent=23 // pred_fallthru
          _
      $region24: #{downsample_forward.1} parent=5 // pred_fallthru
        _
      %p158 = scmp.le.s32.totalorder 1, %s12
      %p159 = scmp.lt.s32.totalorder %s12, 3
      %p160 = pnand %p158, %p159
      %p161 = pneg %p160
      // Predicated region
      $region29: #{downsample_forward.1} parent=5 // pred_check
        _
      $region30: #{downsample_forward.1} parent=5 // pred_check_branch
        %163 = sbr.rel (%p160) target = $region32
      $region31: #{downsample_forward.1} parent=5 // pred_region
        %s164 = ssub.s32 %s12, 1
        %p165 = scmp.lt.s32.totalorder %s22, 1
        %s166 = scalar_select %p165, %s22, 1
        %p167 = scmp.lt.s32.totalorder %s21, 0
        %s168 = scalar_select %p167, %s21, 0
        %s169 = smul.addr %s166, 2
        %s170 = sadd.s32 %s168, %s169
        %s171 = smul.addr %s170, 8
        %s172 = scalar_lea.vmem %s0, %s171
        %p173 = pneg %p52
        %p174 = pneg %p49
        %p175 = pneg %p73
        %p176 = pneg %p70
        %p177 = pneg %p94
        %p178 = pneg %p91
        %p179 = pneg %p122
        %p180 = pneg %p119
        %s181 = sand.u32 %s109, 1
        %s182 = scalar_lea.sflag [#allocation3], %s181
        %s183 = sand.u32 %s109, 1
        %s184 = smul.addr %s183, 8
        %s185 = scalar_lea.vmem [#allocation2], %s184
        %p186 = scmp.lt.s32.totalorder %s22, 1
        %s187 = scalar_select %p186, %s22, 1
        %p188 = scmp.lt.s32.totalorder %s21, 0
        %s189 = scalar_select %p188, %s21, 0
        %s190 = smul.addr %s187, 2
        %s191 = sadd.s32 %s189, %s190
        %s192 = smul.addr %s191, 8
        %s193 = scalar_lea.vmem %s0, %s192
        %v194 = vld [vmem:[%s1] sm:$0xff]
        %v195 = vld [vmem:[%s193] sm:$0xff]
        %v196 = vld [vmem:[%s193 + $0x8] sm:$0xf]
        %v197 = vld [vmem:[%s2] sm:$0xff]
        %199 = vset.pattern.permute.xlu0 0
        %200 = vperm.xlu0 %199, %v197
        %v201 = vpop.permute.xlu0 %200
        %vm203 = vcmask 97280
        %v205 = vsel %vm203, %v194, 0
        %vm207 = vcmask 1043456
        %v209 = vsel %vm207, %v196, 0
        %211 = vmatprep.subr.mxu0 0.0
        %212 = vmatpush1.msra.mxu0 %v195
        %213 = vmatprep.subr.mxu0 0.0
        %214 = vmatpush1.msra.mxu0 %v209
        %215 = vmatprep.subr.mxu0 0.0
        %216 = vmatpush1.msra.mxu0 0.0
        %217 = vmatprep.subr.mxu0 0.0
        %218 = vmatpush1.msra.mxu0 0.0
        %219 = vmatprep.subr.mxu0 0.0
        %220 = vmatpush1.msra.mxu0 0.0
        %221 = vmatprep.subr.mxu0 0.0
        %222 = vmatpush1.msra.mxu0 0.0
        %223 = vmatprep.subr.mxu0 0.0
        %224 = vmatpush1.msra.mxu0 0.0
        %225 = vmatprep.subr.mxu0 0.0
        %226 = vmatpush1.msra.mxu0 0.0
        %227 = vmatprep.subr.mxu0 0.0
        %228 = vmatpush1.msra.mxu0 0.0
        %229 = vmatprep.subr.mxu0 0.0
        %230 = vmatpush1.msra.mxu0 0.0
        %231 = vmatprep.subr.mxu0 0.0
        %232 = vmatpush1.msra.mxu0 0.0
        %233 = vmatprep.subr.mxu0 0.0
        %234 = vmatpush1.msra.mxu0 0.0
        %235 = vmatprep.subr.mxu0 0.0
        %236 = vmatpush1.msra.mxu0 0.0
        %237 = vmatprep.subr.mxu0 0.0
        %238 = vmatpush1.msra.mxu0 0.0
        %239 = vmatprep.subr.mxu0 0.0
        %240 = vmatpush1.msra.mxu0 0.0
        %241 = vmatprep.subr.mxu0 0.0
        %242 = vmatpush1.msra.mxu0 0.0
        %243 = vmatprep.subr.mxu0 0.0
        %244 = vmatpush1.msra.mxu0 0.0
        %245 = vmatprep.subr.mxu0 0.0
        %246 = vmatpush1.msra.mxu0 0.0
        %247 = vmatprep.subr.mxu0 0.0
        %248 = vmatpush1.msra.mxu0 0.0
        %249 = vmatprep.subr.mxu0 0.0
        %250 = vmatpush1.msra.mxu0 0.0
        %251 = vmatprep.subr.mxu0 0.0
        %252 = vmatpush1.msra.mxu0 0.0
        %253 = vmatprep.subr.mxu0 0.0
        %254 = vmatpush1.msra.mxu0 0.0
        %255 = vmatprep.subr.mxu0 0.0
        %256 = vmatpush1.msra.mxu0 0.0
        %257 = vmatprep.subr.mxu0 0.0
        %258 = vmatpush1.msra.mxu0 0.0
        %259 = vmatprep.subr.mxu0 0.0
        %260 = vmatpush1.msra.mxu0 0.0
        %261 = vmatprep.subr.mxu0 0.0
        %262 = vmatpush1.msra.mxu0 0.0
        %263 = vmatprep.subr.mxu0 0.0
        %264 = vmatpush1.msra.mxu0 0.0
        %265 = vmatprep.subr.mxu0 0.0
        %266 = vmatpush1.msra.mxu0 0.0
        %267 = vmatprep.subr.mxu0 0.0
        %268 = vmatpush1.msra.mxu0 0.0
        %269 = vmatprep.subr.mxu0 0.0
        %270 = vmatpush1.msra.mxu0 0.0
        %271 = vmatprep.subr.mxu0 0.0
        %272 = vmatpush1.msra.mxu0 0.0
        %273 = vmatprep.subr.mxu0 0.0
        %274 = vmatpush1.msra.mxu0 0.0
        %275 = vmatprep.mubr.f32.mxu0 0.0
        %276 = vmatmul.mubr.f32.gmra.mrb[0].mxu0 %v205
        %v277 = vpop.f32.mrb[0].mxu0
        %v278 = vadd.f32 %v201, %v277
        %v279 = vpop.f32.mrb[0].mxu0
        %280 = vdwg.mxu0
        %281 = vst [vmem:[%s185] sm:$0xff] %v278
        %s282 = sand.u32 %s109, 1
        %s283 = scalar_lea.sflag [#allocation3], %s282
        %s284 = sand.u32 %s109, 1
        %s285 = smul.addr %s284, 8
        %s286 = scalar_lea.vmem [#allocation2], %s285
        // Predicated region
        $region33: #{downsample_forward.1} parent=31 // pred_check
          %p287 = pneg %p119
        $region34: #{downsample_forward.1} parent=31 // pred_check_branch
          %289 = sbr.rel (%p287) target = $region36
        $region35: #{downsample_forward.1} parent=31 // pred_region
          %s291 = ssub.s32 128, 128
          %292 = vsyncadd %s283, %s291
          %s293 = sadd.s32 %s21, %s22
          %s294 = smul.addr %s293, 128
          %s295 = scalar_lea.hbm %s3, %s294
          %s297 = sshll.u32 %s286, 4
          %s298 = int_to_ptr.vmem [resolvable:$true] %s297
          %300 = dma.vmem_to_hbm [thread:$0]  %s298, 128, %s295, %s283
        $region36: #{downsample_forward.1} parent=31 // pred_fallthru
          _
      $region32: #{downsample_forward.1} parent=5 // pred_fallthru
        _
      %p301 = scmp.le.s32.totalorder 2, %s12
      // Predicated region
      $region37: #{downsample_forward.1} parent=5 // pred_check
        %p302 = pneg %p301
      $region38: #{downsample_forward.1} parent=5 // pred_check_branch
        %304 = sbr.rel (%p302) target = $region40
      $region39: #{downsample_forward.1} parent=5 // pred_region
        %s305 = ssub.s32 %s12, 2
        // Predicated region
        $region41: #{downsample_forward.1} parent=39 // pred_check
          %p306 = pneg %p125
        $region42: #{downsample_forward.1} parent=39 // pred_check_branch
          %308 = sbr.rel (%p306) target = $region44
        $region43: #{downsample_forward.1} parent=39 // pred_region
          %s309 = sand.u32 %s110, 1
          %s310 = scalar_lea.sflag [#allocation3], %s309
          %s311 = sand.u32 %s110, 1
          %s312 = smul.addr %s311, 8
          %s313 = scalar_lea.vmem [#allocation2], %s312
          %314 = dma.done %s310, 128
        $region44: #{downsample_forward.1} parent=39 // pred_fallthru
          _
      $region40: #{downsample_forward.1} parent=5 // pred_fallthru
        _
    $region6: #{downsample_forward.1} parent=1 // loop_footer
      %s16 = sadd.s32 1, %s12
    $region7: #{downsample_forward.1} parent=1 // loop_footer_branch
      %11 = sbr.rel target = $region3
    $region8: #{downsample_forward.1} parent=1 // loop_exit
      _
    %315 = vsyncpa [#allocation3], 1
    %s316 = scalar_lea.sflag [#allocation3], 1
    %317 = vsyncpa %s316, 1

</llo_original>
